<compile_context>
chip_gen: v5e
topology: v5e:2x2
jax: 0.10.0
libtpu: 0.0.40
codegen_flags: <defaults>
</compile_context>

<pallas_src>
import jax
import jax.numpy as jnp
from jax.experimental import pallas as pl
from jax.experimental.pallas import tpu as pltpu

SLOPE = 0.1  # leaky-relu negative slope (module default)


def _round_up(x, m):
    return ((x + m - 1) // m) * m


def _lrelu(h):
    return jnp.where(h >= 0, h, SLOPE * h)


def _make_kernel(latent_dim):
    """Kernel body; weights arrive already in the compute dtype."""

    def dot(a, w):
        # only the activation is cast (no-op when compute dtype == f32)
        return jnp.dot(a.astype(w.dtype), w, preferred_element_type=jnp.float32)

    def kernel(xue_ref,
               eW1, eb1, eW2, eb2, eW3, eb3,      # fused encoder: [g | logv | logl]
               fW1, fb1, fW2, fb2, fW3, fb3,      # decoder mean MLP
               out_ref):
        xue = xue_ref[...]                         # [eps | x | u]
        eps = xue[:, :latent_dim]                  # static slice from lane 0

        # fused encoder: one 3-matmul chain (leaky-relu, slope 0.1); eW1 has zero
        # rows for the eps lanes, so the whole slab feeds the first matmul.
        h = _lrelu(dot(xue, eW1[...]) + eb1[...])
        h = _lrelu(dot(h, eW2[...]) + eb2[...])
        enc = dot(h, eW3[...]) + eb3[...]          # columns: [g | logv | logl]

        g = enc[:, :latent_dim]
        # one exp over the contiguous [logv | logl] slice; square on the VPU
        e = jnp.exp(0.5 * enc[:, latent_dim:3 * latent_dim])   # [sqrt(v) | sqrt(lam)]
        vl = e * e                                              # [v | lam]
        sv = e[:, :latent_dim]

        # reparameterized sample: z = g + sqrt(v) * eps  (Normal.sample)
        z = g + sv * eps

        # decoder mean f(z)
        h = _lrelu(dot(z, fW1[...]) + fb1[...])
        h = _lrelu(dot(h, fW2[...]) + fb2[...])
        f = dot(h, fW3[...]) + fb3[...]

        # single lane-dense packed output: [f | g | v | lam | z] (+ zero pad to 128)
        pieces = [f, g, vl, z]
        pack_w = f.shape[1] + 4 * latent_dim
        pad_w = out_ref.shape[1] - pack_w
        if pad_w > 0:
            pieces.append(jnp.zeros((xue.shape[0], pad_w), jnp.float32))
        out_ref[...] = jnp.concatenate(pieces, axis=1)

    return kernel


def _block_diag3(a, b, c):
    z = lambda r, cc, dt: jnp.zeros((r, cc), dt)
    dt = a.dtype
    row0 = jnp.concatenate([a, z(a.shape[0], b.shape[1], dt), z(a.shape[0], c.shape[1], dt)], axis=1)
    row1 = jnp.concatenate([z(b.shape[0], a.shape[1], dt), b, z(b.shape[0], c.shape[1], dt)], axis=1)
    row2 = jnp.concatenate([z(c.shape[0], a.shape[1], dt), z(c.shape[0], b.shape[1], dt), c], axis=1)
    return jnp.concatenate([row0, row1, row2], axis=0)


def _fuse_encoder_params(params, data_dim, latent_dim):
    """Fuse g / logv / logl MLPs into one 3-matmul chain.

    Fused-output column order is [g | logv | logl].  The activation row layout is
    [eps | x | u]: g/logv see (x,u) (zero rows for eps), logl sees only u
    (zero rows for eps and x).
    """
    gW1, gb1, gW2, gb2, gW3, gb3 = params['g']
    vW1, vb1, vW2, vb2, vW3, vb3 = params['logv']
    lW1, lb1, lW2, lb2, lW3, lb3 = params['logl']

    def pad_rows(W, top):
        return jnp.concatenate([jnp.zeros((top, W.shape[1]), W.dtype), W], axis=0)

    eW1 = jnp.concatenate([pad_rows(gW1, latent_dim),
                           pad_rows(vW1, latent_dim),
                           pad_rows(lW1, latent_dim + data_dim)], axis=1)
    eb1 = jnp.concatenate([gb1, vb1, lb1], axis=1)
    eW2 = _block_diag3(gW2, vW2, lW2)
    eb2 = jnp.concatenate([gb2, vb2, lb2], axis=1)
    eW3 = _block_diag3(gW3, vW3, lW3)
    eb3 = jnp.concatenate([gb3, vb3, lb3], axis=1)
    return [eW1, eb1, eW2, eb2, eW3, eb3]


def ivae_forward(x, u, eps, params, *, block_rows=2048, compute_dtype=jnp.float32):
    """iVAE forward via one tiled pallas_call.

    params: dict with keys 'logl', 'g', 'logv', 'f', each a flat list
            [W1, b1, W2, b2, W3, b3] (W stored as (in, out), b as (1, out)).
    Returns ((f, decoder_var), (g, v), z, (prior_mean, lam)).
    (g, v) is exactly GaussianMLP.forward(x, u) for the encoder.
    compute_dtype=jnp.bfloat16 halves MXU input width on v6e/v7x (keep f32 on v5e
    and for exact numerics; accumulation and elementwise are always f32).
    """
    N, data_dim = x.shape
    aux_dim = u.shape[1]
    latent_dim = params['g'][-2].shape[1]
    d_in = latent_dim + data_dim + aux_dim

    # single activation stream [eps | x | u] (one DMA per row instead of two)
    xue = jnp.concatenate([eps, x, u], axis=1).astype(jnp.float32)

    enc_params = _fuse_encoder_params(params, data_dim, latent_dim)
    dec_params = list(params['f'])

    def prep(plist):
        # weights pre-cast to compute dtype (one-time XLA op); biases stay f32
        return [p.astype(compute_dtype) if i % 2 == 0 else p.astype(jnp.float32)
                for i, p in enumerate(plist)]

    enc_params = prep(enc_params)
    dec_params = prep(dec_params)

    # batch tiling: large tiles (few grid steps) but keep >= 2 steps when the batch
    # allows it so the "parallel" axis can be sharded across v7x's two TensorCores.
    tm_cap = _round_up((N + 1) // 2, 8) if N > 8 else 8
    tm = max(8, min(block_rows, tm_cap))
    n_pad = _round_up(N, tm)
    if n_pad != N:
        xue = jnp.pad(xue, ((0, n_pad - N), (0, 0)))

    pack_w = data_dim + 4 * latent_dim          # f | g | v | lam | z
    out_w = _round_up(pack_w, 128)              # lane-dense output slab
    grid = (n_pad // tm,)

    in_specs = ([pl.BlockSpec((tm, d_in), lambda i: (i, 0))]
                + [pl.BlockSpec(p.shape, lambda i: (0, 0))
                   for p in enc_params + dec_params])
    out_specs = pl.BlockSpec((tm, out_w), lambda i: (i, 0))

    enc_h3 = enc_params[2].shape[0]             # 3 * encoder hidden
    dec_h = dec_params[2].shape[0]              # decoder hidden
    flops = 2 * n_pad * (d_in * enc_h3 + enc_h3 * enc_h3 + enc_h3 * 3 * latent_dim
                         + latent_dim * dec_h + dec_h * dec_h + dec_h * data_dim)
    transcendentals = n_pad * 2 * latent_dim    # one exp over [logv | logl]
    param_bytes = sum(int(p.size) * p.dtype.itemsize for p in enc_params + dec_params)
    bytes_accessed = 4 * n_pad * (d_in + out_w) + param_bytes

    out = pl.pallas_call(
        _make_kernel(latent_dim),
        out_shape=jax.ShapeDtypeStruct((n_pad, out_w), jnp.float32),
        grid=grid,
        in_specs=in_specs,
        out_specs=out_specs,
        compiler_params=pltpu.CompilerParams(
            dimension_semantics=("parallel",),          # megacore on v7x
            vmem_limit_bytes=32 * 1024 * 1024),
        cost_estimate=pl.CostEstimate(
            flops=flops, transcendentals=transcendentals,
            bytes_accessed=bytes_accessed),
    )(xue, *enc_params, *dec_params)

    # slice offsets match the in-kernel packing order [f | g | v | lam | z]
    f = out[:N, :data_dim]
    g = out[:N, data_dim:data_dim + latent_dim]
    v = out[:N, data_dim + latent_dim:data_dim + 2 * latent_dim]
    lam = out[:N, data_dim + 2 * latent_dim:data_dim + 3 * latent_dim]
    z = out[:N, data_dim + 3 * latent_dim:data_dim + 4 * latent_dim]

    # fixed decoder variance / fixed prior mean of the module (constants)
    decoder_var = jnp.full((1,), 0.01, dtype=jnp.float32)
    prior_mean = jnp.zeros((1,), dtype=jnp.float32)
    return (f, decoder_var), (g, v), z, (prior_mean, lam)


def init_mlp_params(key, in_dim, hidden_dim, out_dim):
    """3-layer MLP, xavier-uniform weights (as in weights_init), uniform biases."""
    dims = [in_dim, hidden_dim, hidden_dim, out_dim]
    params = []
    for i in range(3):
        key, kw, kb = jax.random.split(key, 3)
        fan_in, fan_out = dims[i], dims[i + 1]
        w_bound = (6.0 / (fan_in + fan_out)) ** 0.5
        W = jax.random.uniform(kw, (fan_in, fan_out), jnp.float32, -w_bound, w_bound)
        b_bound = 1.0 / (fan_in ** 0.5)
        b = jax.random.uniform(kb, (1, fan_out), jnp.float32, -b_bound, b_bound)
        params.extend([W, b])
    return params


def _mlp_ref(h, p):
    for i in range(0, 6, 2):
        h = h @ p[i] + p[i + 1]
        if i < 4:
            h = jnp.where(h >= 0, h, SLOPE * h)
    return h


if __name__ == "__main__":
    key = jax.random.PRNGKey(0)
    ks = jax.random.split(key, 7)

    # small shapes consistent with the module (x: (N, data_dim), u: (N, aux_dim))
    N, data_dim, latent_dim, aux_dim, hidden_dim = 16, 16, 8, 8, 32

    x = jax.random.normal(ks[0], (N, data_dim), jnp.float32)
    u = jax.random.normal(ks[1], (N, aux_dim), jnp.float32)
    # eps plays the role of Normal.sample's standard-normal draw
    # TODO(synk): torch's internal RNG for Normal.sample has no Pallas
    # equivalent; the standard-normal draw is supplied as an input instead.
    eps = jax.random.normal(ks[2], (N, latent_dim), jnp.float32)

    params = {
        'logl': init_mlp_params(ks[3], aux_dim, hidden_dim, latent_dim),
        'g':    init_mlp_params(ks[4], data_dim + aux_dim, hidden_dim, latent_dim),
        'logv': init_mlp_params(ks[5], data_dim + aux_dim, hidden_dim, latent_dim),
        'f':    init_mlp_params(ks[6], latent_dim, hidden_dim, data_dim),
    }

    # default block_rows: with N=16 the tile cap keeps a 2-step grid
    # (exercises the multi-tile pipelined + parallel path)
    (f_mean, dec_var), (g_mean, enc_var), z, (prior_mean, lam) = ivae_forward(
        x, u, eps, params)

    for arr in (f_mean, dec_var, g_mean, enc_var, z, prior_mean, lam):
        jax.block_until_ready(arr)

    # pure-JAX reference (same math, unfused) — guards against slice-permutation
    xu_ref = jnp.concatenate([x, u], axis=1)
    g_ref = _mlp_ref(xu_ref, params['g'])
    v_ref = jnp.exp(_mlp_ref(xu_ref, params['logv']))
    lam_ref = jnp.exp(_mlp_ref(u, params['logl']))
    z_ref = g_ref + jnp.sqrt(v_ref) * eps
    f_ref = _mlp_ref(z_ref, params['f'])

    for got, want in ((f_mean, f_ref), (g_mean, g_ref), (enc_var, v_ref),
                      (z, z_ref), (lam, lam_ref)):
        err = float(jnp.max(jnp.abs(got - want)))
        assert err < 1e-2, f"mismatch vs reference: {err}"

    print("KERNEL_OK")
</pallas_src>

<mosaic_0001>
module attributes {stable_mosaic.version = 11 : i64} {
  func.func @kernel(%arg0: i32, %arg1: memref<8x32xf32, #tpu.memory_space<vmem>>, %arg2: memref<32x96xf32, #tpu.memory_space<vmem>>, %arg3: memref<1x96xf32, #tpu.memory_space<vmem>>, %arg4: memref<96x96xf32, #tpu.memory_space<vmem>>, %arg5: memref<1x96xf32, #tpu.memory_space<vmem>>, %arg6: memref<96x24xf32, #tpu.memory_space<vmem>>, %arg7: memref<1x24xf32, #tpu.memory_space<vmem>>, %arg8: memref<8x32xf32, #tpu.memory_space<vmem>>, %arg9: memref<1x32xf32, #tpu.memory_space<vmem>>, %arg10: memref<32x32xf32, #tpu.memory_space<vmem>>, %arg11: memref<1x32xf32, #tpu.memory_space<vmem>>, %arg12: memref<32x16xf32, #tpu.memory_space<vmem>>, %arg13: memref<1x16xf32, #tpu.memory_space<vmem>>, %arg14: memref<8x128xf32, #tpu.memory_space<vmem>>) attributes {dimension_semantics = [#tpu.dimension_semantics<parallel>], iteration_bounds = array<i64: 2>, scalar_prefetch = 0 : i64, scratch_operands = 0 : i64, tpu.core_type = #tpu.core_type<tc>, window_params = [{transform_indices = @transform_0, window_bounds = array<i64: 8, 32>}, {pipeline_mode = #tpu.pipeline_mode<synchronous>, transform_indices = @transform_1, window_bounds = array<i64: 32, 96>}, {pipeline_mode = #tpu.pipeline_mode<synchronous>, transform_indices = @transform_2, window_bounds = array<i64: 1, 96>}, {pipeline_mode = #tpu.pipeline_mode<synchronous>, transform_indices = @transform_3, window_bounds = array<i64: 96, 96>}, {pipeline_mode = #tpu.pipeline_mode<synchronous>, transform_indices = @transform_4, window_bounds = array<i64: 1, 96>}, {pipeline_mode = #tpu.pipeline_mode<synchronous>, transform_indices = @transform_5, window_bounds = array<i64: 96, 24>}, {pipeline_mode = #tpu.pipeline_mode<synchronous>, transform_indices = @transform_6, window_bounds = array<i64: 1, 24>}, {pipeline_mode = #tpu.pipeline_mode<synchronous>, transform_indices = @transform_7, window_bounds = array<i64: 8, 32>}, {pipeline_mode = #tpu.pipeline_mode<synchronous>, transform_indices = @transform_8, window_bounds = array<i64: 1, 32>}, {pipeline_mode = #tpu.pipeline_mode<synchronous>, transform_indices = @transform_9, window_bounds = array<i64: 32, 32>}, {pipeline_mode = #tpu.pipeline_mode<synchronous>, transform_indices = @transform_10, window_bounds = array<i64: 1, 32>}, {pipeline_mode = #tpu.pipeline_mode<synchronous>, transform_indices = @transform_11, window_bounds = array<i64: 32, 16>}, {pipeline_mode = #tpu.pipeline_mode<synchronous>, transform_indices = @transform_12, window_bounds = array<i64: 1, 16>}, {transform_indices = @transform_13, window_bounds = array<i64: 8, 128>}]} {
    %c0 = arith.constant 0 : index
    %c0_0 = arith.constant 0 : index
    %0 = vector.load %arg1[%c0, %c0_0] : memref<8x32xf32, #tpu.memory_space<vmem>>, vector<8x32xf32>
    %1 = vector.extract_strided_slice %0 {offsets = [0, 0], sizes = [8, 8], strides = [1, 1]} : vector<8x32xf32> to vector<8x8xf32>
    %c0_1 = arith.constant 0 : index
    %c0_2 = arith.constant 0 : index
    %2 = vector.load %arg2[%c0_1, %c0_2] : memref<32x96xf32, #tpu.memory_space<vmem>>, vector<32x96xf32>
    %cst = arith.constant dense<0.000000e+00> : vector<8x96xf32>
    %3 = tpu.matmul %0, %2, %cst {dimension_numbers = #tpu.dot_dimension_numbers<[1], [0], [0], [1], [0, 0, 1, 1], [], []>} : vector<8x32xf32>, vector<32x96xf32>, vector<8x96xf32> -> vector<8x96xf32>
    %c0_3 = arith.constant 0 : index
    %c0_4 = arith.constant 0 : index
    %4 = vector.load %arg3[%c0_3, %c0_4] : memref<1x96xf32, #tpu.memory_space<vmem>>, vector<1x96xf32>
    %5 = vector.broadcast %4 : vector<1x96xf32> to vector<8x96xf32>
    %6 = arith.addf %3, %5 : vector<8x96xf32>
    %cst_5 = arith.constant 0.000000e+00 : f32
    %7 = vector.broadcast %cst_5 : f32 to vector<8x96xf32>
    %8 = arith.cmpf oge, %6, %7 : vector<8x96xf32>
    %cst_6 = arith.constant 1.000000e-01 : f32
    %9 = vector.broadcast %cst_6 : f32 to vector<8x96xf32>
    %10 = arith.mulf %9, %6 : vector<8x96xf32>
    %11 = arith.select %8, %6, %10 : vector<8x96xi1>, vector<8x96xf32>
    %c0_7 = arith.constant 0 : index
    %c0_8 = arith.constant 0 : index
    %12 = vector.load %arg4[%c0_7, %c0_8] : memref<96x96xf32, #tpu.memory_space<vmem>>, vector<96x96xf32>
    %cst_9 = arith.constant dense<0.000000e+00> : vector<8x96xf32>
    %13 = tpu.matmul %11, %12, %cst_9 {dimension_numbers = #tpu.dot_dimension_numbers<[1], [0], [0], [1], [0, 0, 1, 1], [], []>} : vector<8x96xf32>, vector<96x96xf32>, vector<8x96xf32> -> vector<8x96xf32>
    %c0_10 = arith.constant 0 : index
    %c0_11 = arith.constant 0 : index
    %14 = vector.load %arg5[%c0_10, %c0_11] : memref<1x96xf32, #tpu.memory_space<vmem>>, vector<1x96xf32>
    %15 = vector.broadcast %14 : vector<1x96xf32> to vector<8x96xf32>
    %16 = arith.addf %13, %15 : vector<8x96xf32>
    %cst_12 = arith.constant 0.000000e+00 : f32
    %17 = vector.broadcast %cst_12 : f32 to vector<8x96xf32>
    %18 = arith.cmpf oge, %16, %17 : vector<8x96xf32>
    %cst_13 = arith.constant 1.000000e-01 : f32
    %19 = vector.broadcast %cst_13 : f32 to vector<8x96xf32>
    %20 = arith.mulf %19, %16 : vector<8x96xf32>
    %21 = arith.select %18, %16, %20 : vector<8x96xi1>, vector<8x96xf32>
    %c0_14 = arith.constant 0 : index
    %c0_15 = arith.constant 0 : index
    %22 = vector.load %arg6[%c0_14, %c0_15] : memref<96x24xf32, #tpu.memory_space<vmem>>, vector<96x24xf32>
    %cst_16 = arith.constant dense<0.000000e+00> : vector<8x24xf32>
    %23 = tpu.matmul %21, %22, %cst_16 {dimension_numbers = #tpu.dot_dimension_numbers<[1], [0], [0], [1], [0, 0, 1, 1], [], []>} : vector<8x96xf32>, vector<96x24xf32>, vector<8x24xf32> -> vector<8x24xf32>
    %c0_17 = arith.constant 0 : index
    %c0_18 = arith.constant 0 : index
    %24 = vector.load %arg7[%c0_17, %c0_18] : memref<1x24xf32, #tpu.memory_space<vmem>>, vector<1x24xf32>
    %25 = vector.broadcast %24 : vector<1x24xf32> to vector<8x24xf32>
    %26 = arith.addf %23, %25 : vector<8x24xf32>
    %27 = vector.extract_strided_slice %26 {offsets = [0, 0], sizes = [8, 8], strides = [1, 1]} : vector<8x24xf32> to vector<8x8xf32>
    %28 = vector.extract_strided_slice %26 {offsets = [0, 8], sizes = [8, 16], strides = [1, 1]} : vector<8x24xf32> to vector<8x16xf32>
    %cst_19 = arith.constant 5.000000e-01 : f32
    %29 = vector.broadcast %cst_19 : f32 to vector<8x16xf32>
    %30 = arith.mulf %29, %28 : vector<8x16xf32>
    %31 = math.exp %30 : vector<8x16xf32>
    %32 = arith.mulf %31, %31 : vector<8x16xf32>
    %33 = vector.extract_strided_slice %31 {offsets = [0, 0], sizes = [8, 8], strides = [1, 1]} : vector<8x16xf32> to vector<8x8xf32>
    %34 = arith.mulf %33, %1 : vector<8x8xf32>
    %35 = arith.addf %27, %34 : vector<8x8xf32>
    %c0_20 = arith.constant 0 : index
    %c0_21 = arith.constant 0 : index
    %36 = vector.load %arg8[%c0_20, %c0_21] : memref<8x32xf32, #tpu.memory_space<vmem>>, vector<8x32xf32>
    %cst_22 = arith.constant dense<0.000000e+00> : vector<8x32xf32>
    %37 = tpu.matmul %35, %36, %cst_22 {dimension_numbers = #tpu.dot_dimension_numbers<[1], [0], [0], [1], [0, 0, 1, 1], [], []>} : vector<8x8xf32>, vector<8x32xf32>, vector<8x32xf32> -> vector<8x32xf32>
    %c0_23 = arith.constant 0 : index
    %c0_24 = arith.constant 0 : index
    %38 = vector.load %arg9[%c0_23, %c0_24] : memref<1x32xf32, #tpu.memory_space<vmem>>, vector<1x32xf32>
    %39 = vector.broadcast %38 : vector<1x32xf32> to vector<8x32xf32>
    %40 = arith.addf %37, %39 : vector<8x32xf32>
    %cst_25 = arith.constant 0.000000e+00 : f32
    %41 = vector.broadcast %cst_25 : f32 to vector<8x32xf32>
    %42 = arith.cmpf oge, %40, %41 : vector<8x32xf32>
    %cst_26 = arith.constant 1.000000e-01 : f32
    %43 = vector.broadcast %cst_26 : f32 to vector<8x32xf32>
    %44 = arith.mulf %43, %40 : vector<8x32xf32>
    %45 = arith.select %42, %40, %44 : vector<8x32xi1>, vector<8x32xf32>
    %c0_27 = arith.constant 0 : index
    %c0_28 = arith.constant 0 : index
    %46 = vector.load %arg10[%c0_27, %c0_28] : memref<32x32xf32, #tpu.memory_space<vmem>>, vector<32x32xf32>
    %cst_29 = arith.constant dense<0.000000e+00> : vector<8x32xf32>
    %47 = tpu.matmul %45, %46, %cst_29 {dimension_numbers = #tpu.dot_dimension_numbers<[1], [0], [0], [1], [0, 0, 1, 1], [], []>} : vector<8x32xf32>, vector<32x32xf32>, vector<8x32xf32> -> vector<8x32xf32>
    %c0_30 = arith.constant 0 : index
    %c0_31 = arith.constant 0 : index
    %48 = vector.load %arg11[%c0_30, %c0_31] : memref<1x32xf32, #tpu.memory_space<vmem>>, vector<1x32xf32>
    %49 = vector.broadcast %48 : vector<1x32xf32> to vector<8x32xf32>
    %50 = arith.addf %47, %49 : vector<8x32xf32>
    %cst_32 = arith.constant 0.000000e+00 : f32
    %51 = vector.broadcast %cst_32 : f32 to vector<8x32xf32>
    %52 = arith.cmpf oge, %50, %51 : vector<8x32xf32>
    %cst_33 = arith.constant 1.000000e-01 : f32
    %53 = vector.broadcast %cst_33 : f32 to vector<8x32xf32>
    %54 = arith.mulf %53, %50 : vector<8x32xf32>
    %55 = arith.select %52, %50, %54 : vector<8x32xi1>, vector<8x32xf32>
    %c0_34 = arith.constant 0 : index
    %c0_35 = arith.constant 0 : index
    %56 = vector.load %arg12[%c0_34, %c0_35] : memref<32x16xf32, #tpu.memory_space<vmem>>, vector<32x16xf32>
    %cst_36 = arith.constant dense<0.000000e+00> : vector<8x16xf32>
    %57 = tpu.matmul %55, %56, %cst_36 {dimension_numbers = #tpu.dot_dimension_numbers<[1], [0], [0], [1], [0, 0, 1, 1], [], []>} : vector<8x32xf32>, vector<32x16xf32>, vector<8x16xf32> -> vector<8x16xf32>
    %c0_37 = arith.constant 0 : index
    %c0_38 = arith.constant 0 : index
    %58 = vector.load %arg13[%c0_37, %c0_38] : memref<1x16xf32, #tpu.memory_space<vmem>>, vector<1x16xf32>
    %59 = vector.broadcast %58 : vector<1x16xf32> to vector<8x16xf32>
    %60 = arith.addf %57, %59 : vector<8x16xf32>
    %cst_39 = arith.constant 0.000000e+00 : f32
    %61 = vector.broadcast %cst_39 : f32 to vector<8x80xf32>
    %62 = tpu.concatenate %60, %27, %32, %35, %61 in 1 : vector<8x16xf32>, vector<8x8xf32>, vector<8x16xf32>, vector<8x8xf32>, vector<8x80xf32> -> vector<8x128xf32>
    %c0_40 = arith.constant 0 : index
    %c0_41 = arith.constant 0 : index
    %63 = vector.load %arg14[%c0_40, %c0_41] : memref<8x128xf32, #tpu.memory_space<vmem>>, vector<8x128xf32>
    tpu.vector_store %arg14[%c0_40, %c0_41], %62 {strides = array<i32>} : memref<8x128xf32, #tpu.memory_space<vmem>>, vector<8x128xf32>,
    return
  }
  func.func @transform_0(%arg0: i32) -> (i32, i32) {
    %c0_i32 = arith.constant 0 : i32
    %c0_i32_0 = arith.constant 0 : i32
    return %arg0, %c0_i32 : i32, i32
  }
  func.func @transform_1(%arg0: i32) -> (i32, i32) {
    %c0_i32 = arith.constant 0 : i32
    %c0_i32_0 = arith.constant 0 : i32
    %c0_i32_1 = arith.constant 0 : i32
    return %c0_i32, %c0_i32_0 : i32, i32
  }
  func.func @transform_2(%arg0: i32) -> (i32, i32) {
    %c0_i32 = arith.constant 0 : i32
    %c0_i32_0 = arith.constant 0 : i32
    %c0_i32_1 = arith.constant 0 : i32
    return %c0_i32, %c0_i32_0 : i32, i32
  }
  func.func @transform_3(%arg0: i32) -> (i32, i32) {
    %c0_i32 = arith.constant 0 : i32
    %c0_i32_0 = arith.constant 0 : i32
    %c0_i32_1 = arith.constant 0 : i32
    return %c0_i32, %c0_i32_0 : i32, i32
  }
  func.func @transform_4(%arg0: i32) -> (i32, i32) {
    %c0_i32 = arith.constant 0 : i32
    %c0_i32_0 = arith.constant 0 : i32
    %c0_i32_1 = arith.constant 0 : i32
    return %c0_i32, %c0_i32_0 : i32, i32
  }
  func.func @transform_5(%arg0: i32) -> (i32, i32) {
    %c0_i32 = arith.constant 0 : i32
    %c0_i32_0 = arith.constant 0 : i32
    %c0_i32_1 = arith.constant 0 : i32
    return %c0_i32, %c0_i32_0 : i32, i32
  }
  func.func @transform_6(%arg0: i32) -> (i32, i32) {
    %c0_i32 = arith.constant 0 : i32
    %c0_i32_0 = arith.constant 0 : i32
    %c0_i32_1 = arith.constant 0 : i32
    return %c0_i32, %c0_i32_0 : i32, i32
  }
  func.func @transform_7(%arg0: i32) -> (i32, i32) {
    %c0_i32 = arith.constant 0 : i32
    %c0_i32_0 = arith.constant 0 : i32
    %c0_i32_1 = arith.constant 0 : i32
    return %c0_i32, %c0_i32_0 : i32, i32
  }
  func.func @transform_8(%arg0: i32) -> (i32, i32) {
    %c0_i32 = arith.constant 0 : i32
    %c0_i32_0 = arith.constant 0 : i32
    %c0_i32_1 = arith.constant 0 : i32
    return %c0_i32, %c0_i32_0 : i32, i32
  }
  func.func @transform_9(%arg0: i32) -> (i32, i32) {
    %c0_i32 = arith.constant 0 : i32
    %c0_i32_0 = arith.constant 0 : i32
    %c0_i32_1 = arith.constant 0 : i32
    return %c0_i32, %c0_i32_0 : i32, i32
  }
  func.func @transform_10(%arg0: i32) -> (i32, i32) {
    %c0_i32 = arith.constant 0 : i32
    %c0_i32_0 = arith.constant 0 : i32
    %c0_i32_1 = arith.constant 0 : i32
    return %c0_i32, %c0_i32_0 : i32, i32
  }
  func.func @transform_11(%arg0: i32) -> (i32, i32) {
    %c0_i32 = arith.constant 0 : i32
    %c0_i32_0 = arith.constant 0 : i32
    %c0_i32_1 = arith.constant 0 : i32
    return %c0_i32, %c0_i32_0 : i32, i32
  }
  func.func @transform_12(%arg0: i32) -> (i32, i32) {
    %c0_i32 = arith.constant 0 : i32
    %c0_i32_0 = arith.constant 0 : i32
    %c0_i32_1 = arith.constant 0 : i32
    return %c0_i32, %c0_i32_0 : i32, i32
  }
  func.func @transform_13(%arg0: i32) -> (i32, i32) {
    %c0_i32 = arith.constant 0 : i32
    %c0_i32_0 = arith.constant 0 : i32
    return %arg0, %c0_i32 : i32, i32
  }
}

</mosaic_0001>

<llo_original>
// kernel: tpu_custom_call.1
$region0: #{tpu_custom_call.1}
  #allocation0 [shape = 'u32[]', space=smem, size = 0x4, offset = 0x4, fixed_abs, tag = 'smem constant byte address 0x4 - core index']
  #allocation1 [shape = 'u32[72,128]{1,0:T(1,128)}', space=vmem, size = 0x9000, scoped, tag = 'internal scratch']
  %s0 = inlined_call_operand.hbm [shape: f32[16,32], index: 0, kind: input, shape index: {}]
  %s1 = inlined_call_operand.vmem [shape: f32[32,96], index: 1, kind: input, shape index: {}]
  %s2 = inlined_call_operand.vmem [shape: f32[1,96], index: 2, kind: input, shape index: {}]
  %s3 = inlined_call_operand.vmem [shape: f32[96,96], index: 3, kind: input, shape index: {}]
  %s4 = inlined_call_operand.vmem [shape: f32[1,96], index: 4, kind: input, shape index: {}]
  %s5 = inlined_call_operand.vmem [shape: f32[96,24], index: 5, kind: input, shape index: {}]
  %s6 = inlined_call_operand.vmem [shape: f32[1,24], index: 6, kind: input, shape index: {}]
  %s7 = inlined_call_operand.vmem [shape: f32[8,32], index: 7, kind: input, shape index: {}]
  %s8 = inlined_call_operand.vmem [shape: f32[1,32], index: 8, kind: input, shape index: {}]
  %s9 = inlined_call_operand.vmem [shape: f32[32,32], index: 9, kind: input, shape index: {}]
  %s10 = inlined_call_operand.vmem [shape: f32[1,32], index: 10, kind: input, shape index: {}]
  %s11 = inlined_call_operand.vmem [shape: f32[32,16], index: 11, kind: input, shape index: {}]
  %s12 = inlined_call_operand.vmem [shape: f32[1,16], index: 12, kind: input, shape index: {}]
  %s13 = inlined_call_operand.hbm [shape: f32[16,128], index: 13, kind: output, shape index: {}]
  %s14 = sld [smem:[#allocation0]]
  $region89: #{tpu_custom_call.1} parent=0
    _
  %s16 = ssub.s32 1, %s14
  %s17 = scalar_select 0, %s16, %s14
  $region1: #{tpu_custom_call.1} parent=0
    #allocation2 [shape = 'u8[8192]{0}', space=vmem, size = 0x2000, scoped, tag = 'input window, operand 0']
    #allocation3 [shape = 's32[2]{0}', space=sflag, size = 0x8, scoped, tag = 'scoped memory for tpu_custom_call.1']
    #allocation4 [shape = 's32[2]{0}', space=sflag, size = 0x8, scoped, tag = 'scoped memory for tpu_custom_call.1']
    #allocation5 [shape = 'u8[8192]{0}', space=vmem, size = 0x2000, scoped, tag = 'output window, operand 0']
    %18 = vsyncpa [#allocation3], 0
    %s19 = scalar_lea.sflag [#allocation3], 1
    %20 = vsyncpa %s19, 0
    %21 = vsyncpa [#allocation4], 0
    %s22 = scalar_lea.sflag [#allocation4], 1
    %23 = vsyncpa %s22, 0
    loop: start=0, step=1, limit=4
    $region2: #{tpu_custom_call.1} parent=1 // loop_pre_header
      _
    $region3: #{tpu_custom_call.1} parent=1 // loop_header
      %s25 = sphi 0, %s29
      %p26 = scmp.ge.s32.totalorder %s25, 4
      %s35 = sphi 0, %s37
      %s38 = sphi 0, %s35
      %s39 = sphi 0, %s38
      %s55 = sphi 0, %s39
      %s59 = sphi 0, %s59
      %s61 = sphi 0, %s59
      %s62 = sphi 0, %s61
      %s76 = sphi 0, %s62
      %s80 = sphi 0, %s80
      %s82 = sphi 0, %s80
      %s83 = sphi 0, %s82
      %s97 = sphi 0, %s83
      %s101 = sphi 0, %s101
      %s103 = sphi 0, %s101
      %s104 = sphi 0, %s103
      %s118 = sphi 0, %s104
      %s122 = sphi 0, %s122
      %s124 = sphi 0, %s122
      %s125 = sphi 0, %s124
      %s139 = sphi 0, %s125
      %s143 = sphi 0, %s143
      %s145 = sphi 0, %s143
      %s146 = sphi 0, %s145
      %s160 = sphi 0, %s146
      %s164 = sphi 0, %s164
      %s166 = sphi 0, %s164
      %s167 = sphi 0, %s166
      %s181 = sphi 0, %s167
      %s185 = sphi 0, %s185
      %s187 = sphi 0, %s185
      %s188 = sphi 0, %s187
      %s202 = sphi 0, %s188
      %s206 = sphi 0, %s206
      %s208 = sphi 0, %s206
      %s209 = sphi 0, %s208
      %s223 = sphi 0, %s209
      %s227 = sphi 0, %s227
      %s229 = sphi 0, %s227
      %s230 = sphi 0, %s229
      %s244 = sphi 0, %s230
      %s248 = sphi 0, %s248
      %s250 = sphi 0, %s248
      %s251 = sphi 0, %s250
      %s265 = sphi 0, %s251
      %s269 = sphi 0, %s269
      %s271 = sphi 0, %s269
      %s272 = sphi 0, %s271
      %s286 = sphi 0, %s272
      %s290 = sphi 0, %s290
      %s292 = sphi 0, %s290
      %s293 = sphi 0, %s292
      %s307 = sphi 0, %s293
      %s313 = sphi 0, %s315
      %s316 = sphi 0, %s313
      %s317 = sphi 0, %s316
      %s333 = sphi 0, %s317
    $region4: #{tpu_custom_call.1} parent=1 // loop_header_branch
      %28 = sbr.rel (%p26) target = $region8
    $region5: #{tpu_custom_call.1} parent=1 // loop_body
      %s30 = ssub.s32 %s25, 1
      %s31 = ssub.s32 %s25, 2
      %s32 = sadd.s32 %s25, 1
      %s33 = ssub.s32 %s25, %s32
      %p34 = scmp.eq.s32.totalorder %s33, 0
      %s36 = sadd.s32 %s35, 1
      %s37 = scalar_select %p34, %s35, %s36
      %p40 = pneg %p34
      %p41 = scmp.eq.s32.totalorder %s25, 1
      %p42 = por %p40, %p41
      %p43 = scmp.ne.s32.totalorder %s35, %s38
      %p44 = scmp.eq.s32.totalorder %s25, 0
      %p45 = por %p43, %p44
      %p46 = scmp.ne.s32.totalorder %s35, %s38
      %p47 = scmp.eq.s32.totalorder %s30, 1
      %p48 = por %p46, %p47
      %p49 = scmp.ne.s32.totalorder %s38, %s39
      %p50 = scmp.eq.s32.totalorder %s30, 0
      %p51 = por %p49, %p50
      %p52 = scmp.ne.s32.totalorder %s38, %s39
      %p53 = scmp.eq.s32.totalorder %s31, 1
      %p54 = por %p52, %p53
      %p56 = scmp.ne.s32.totalorder %s39, %s55
      %p57 = scmp.eq.s32.totalorder %s31, 0
      %p58 = por %p56, %p57
      %s60 = sadd.s32 %s59, 1
      %p63 = scmp.eq.s32.totalorder %s25, 1
      %p64 = scmp.ne.s32.totalorder %s59, %s61
      %p65 = scmp.eq.s32.totalorder %s25, 0
      %p66 = por %p64, %p65
      %p67 = scmp.ne.s32.totalorder %s59, %s61
      %p68 = scmp.eq.s32.totalorder %s30, 1
      %p69 = por %p67, %p68
      %p70 = scmp.ne.s32.totalorder %s61, %s62
      %p71 = scmp.eq.s32.totalorder %s30, 0
      %p72 = por %p70, %p71
      %p73 = scmp.ne.s32.totalorder %s61, %s62
      %p74 = scmp.eq.s32.totalorder %s31, 1
      %p75 = por %p73, %p74
      %p77 = scmp.ne.s32.totalorder %s62, %s76
      %p78 = scmp.eq.s32.totalorder %s31, 0
      %p79 = por %p77, %p78
      %s81 = sadd.s32 %s80, 1
      %p84 = scmp.eq.s32.totalorder %s25, 1
      %p85 = scmp.ne.s32.totalorder %s80, %s82
      %p86 = scmp.eq.s32.totalorder %s25, 0
      %p87 = por %p85, %p86
      %p88 = scmp.ne.s32.totalorder %s80, %s82
      %p89 = scmp.eq.s32.totalorder %s30, 1
      %p90 = por %p88, %p89
      %p91 = scmp.ne.s32.totalorder %s82, %s83
      %p92 = scmp.eq.s32.totalorder %s30, 0
      %p93 = por %p91, %p92
      %p94 = scmp.ne.s32.totalorder %s82, %s83
      %p95 = scmp.eq.s32.totalorder %s31, 1
      %p96 = por %p94, %p95
      %p98 = scmp.ne.s32.totalorder %s83, %s97
      %p99 = scmp.eq.s32.totalorder %s31, 0
      %p100 = por %p98, %p99
      %s102 = sadd.s32 %s101, 1
      %p105 = scmp.eq.s32.totalorder %s25, 1
      %p106 = scmp.ne.s32.totalorder %s101, %s103
      %p107 = scmp.eq.s32.totalorder %s25, 0
      %p108 = por %p106, %p107
      %p109 = scmp.ne.s32.totalorder %s101, %s103
      %p110 = scmp.eq.s32.totalorder %s30, 1
      %p111 = por %p109, %p110
      %p112 = scmp.ne.s32.totalorder %s103, %s104
      %p113 = scmp.eq.s32.totalorder %s30, 0
      %p114 = por %p112, %p113
      %p115 = scmp.ne.s32.totalorder %s103, %s104
      %p116 = scmp.eq.s32.totalorder %s31, 1
      %p117 = por %p115, %p116
      %p119 = scmp.ne.s32.totalorder %s104, %s118
      %p120 = scmp.eq.s32.totalorder %s31, 0
      %p121 = por %p119, %p120
      %s123 = sadd.s32 %s122, 1
      %p126 = scmp.eq.s32.totalorder %s25, 1
      %p127 = scmp.ne.s32.totalorder %s122, %s124
      %p128 = scmp.eq.s32.totalorder %s25, 0
      %p129 = por %p127, %p128
      %p130 = scmp.ne.s32.totalorder %s122, %s124
      %p131 = scmp.eq.s32.totalorder %s30, 1
      %p132 = por %p130, %p131
      %p133 = scmp.ne.s32.totalorder %s124, %s125
      %p134 = scmp.eq.s32.totalorder %s30, 0
      %p135 = por %p133, %p134
      %p136 = scmp.ne.s32.totalorder %s124, %s125
      %p137 = scmp.eq.s32.totalorder %s31, 1
      %p138 = por %p136, %p137
      %p140 = scmp.ne.s32.totalorder %s125, %s139
      %p141 = scmp.eq.s32.totalorder %s31, 0
      %p142 = por %p140, %p141
      %s144 = sadd.s32 %s143, 1
      %p147 = scmp.eq.s32.totalorder %s25, 1
      %p148 = scmp.ne.s32.totalorder %s143, %s145
      %p149 = scmp.eq.s32.totalorder %s25, 0
      %p150 = por %p148, %p149
      %p151 = scmp.ne.s32.totalorder %s143, %s145
      %p152 = scmp.eq.s32.totalorder %s30, 1
      %p153 = por %p151, %p152
      %p154 = scmp.ne.s32.totalorder %s145, %s146
      %p155 = scmp.eq.s32.totalorder %s30, 0
      %p156 = por %p154, %p155
      %p157 = scmp.ne.s32.totalorder %s145, %s146
      %p158 = scmp.eq.s32.totalorder %s31, 1
      %p159 = por %p157, %p158
      %p161 = scmp.ne.s32.totalorder %s146, %s160
      %p162 = scmp.eq.s32.totalorder %s31, 0
      %p163 = por %p161, %p162
      %s165 = sadd.s32 %s164, 1
      %p168 = scmp.eq.s32.totalorder %s25, 1
      %p169 = scmp.ne.s32.totalorder %s164, %s166
      %p170 = scmp.eq.s32.totalorder %s25, 0
      %p171 = por %p169, %p170
      %p172 = scmp.ne.s32.totalorder %s164, %s166
      %p173 = scmp.eq.s32.totalorder %s30, 1
      %p174 = por %p172, %p173
      %p175 = scmp.ne.s32.totalorder %s166, %s167
      %p176 = scmp.eq.s32.totalorder %s30, 0
      %p177 = por %p175, %p176
      %p178 = scmp.ne.s32.totalorder %s166, %s167
      %p179 = scmp.eq.s32.totalorder %s31, 1
      %p180 = por %p178, %p179
      %p182 = scmp.ne.s32.totalorder %s167, %s181
      %p183 = scmp.eq.s32.totalorder %s31, 0
      %p184 = por %p182, %p183
      %s186 = sadd.s32 %s185, 1
      %p189 = scmp.eq.s32.totalorder %s25, 1
      %p190 = scmp.ne.s32.totalorder %s185, %s187
      %p191 = scmp.eq.s32.totalorder %s25, 0
      %p192 = por %p190, %p191
      %p193 = scmp.ne.s32.totalorder %s185, %s187
      %p194 = scmp.eq.s32.totalorder %s30, 1
      %p195 = por %p193, %p194
      %p196 = scmp.ne.s32.totalorder %s187, %s188
      %p197 = scmp.eq.s32.totalorder %s30, 0
      %p198 = por %p196, %p197
      %p199 = scmp.ne.s32.totalorder %s187, %s188
      %p200 = scmp.eq.s32.totalorder %s31, 1
      %p201 = por %p199, %p200
      %p203 = scmp.ne.s32.totalorder %s188, %s202
      %p204 = scmp.eq.s32.totalorder %s31, 0
      %p205 = por %p203, %p204
      %s207 = sadd.s32 %s206, 1
      %p210 = scmp.eq.s32.totalorder %s25, 1
      %p211 = scmp.ne.s32.totalorder %s206, %s208
      %p212 = scmp.eq.s32.totalorder %s25, 0
      %p213 = por %p211, %p212
      %p214 = scmp.ne.s32.totalorder %s206, %s208
      %p215 = scmp.eq.s32.totalorder %s30, 1
      %p216 = por %p214, %p215
      %p217 = scmp.ne.s32.totalorder %s208, %s209
      %p218 = scmp.eq.s32.totalorder %s30, 0
      %p219 = por %p217, %p218
      %p220 = scmp.ne.s32.totalorder %s208, %s209
      %p221 = scmp.eq.s32.totalorder %s31, 1
      %p222 = por %p220, %p221
      %p224 = scmp.ne.s32.totalorder %s209, %s223
      %p225 = scmp.eq.s32.totalorder %s31, 0
      %p226 = por %p224, %p225
      %s228 = sadd.s32 %s227, 1
      %p231 = scmp.eq.s32.totalorder %s25, 1
      %p232 = scmp.ne.s32.totalorder %s227, %s229
      %p233 = scmp.eq.s32.totalorder %s25, 0
      %p234 = por %p232, %p233
      %p235 = scmp.ne.s32.totalorder %s227, %s229
      %p236 = scmp.eq.s32.totalorder %s30, 1
      %p237 = por %p235, %p236
      %p238 = scmp.ne.s32.totalorder %s229, %s230
      %p239 = scmp.eq.s32.totalorder %s30, 0
      %p240 = por %p238, %p239
      %p241 = scmp.ne.s32.totalorder %s229, %s230
      %p242 = scmp.eq.s32.totalorder %s31, 1
      %p243 = por %p241, %p242
      %p245 = scmp.ne.s32.totalorder %s230, %s244
      %p246 = scmp.eq.s32.totalorder %s31, 0
      %p247 = por %p245, %p246
      %s249 = sadd.s32 %s248, 1
      %p252 = scmp.eq.s32.totalorder %s25, 1
      %p253 = scmp.ne.s32.totalorder %s248, %s250
      %p254 = scmp.eq.s32.totalorder %s25, 0
      %p255 = por %p253, %p254
      %p256 = scmp.ne.s32.totalorder %s248, %s250
      %p257 = scmp.eq.s32.totalorder %s30, 1
      %p258 = por %p256, %p257
      %p259 = scmp.ne.s32.totalorder %s250, %s251
      %p260 = scmp.eq.s32.totalorder %s30, 0
      %p261 = por %p259, %p260
      %p262 = scmp.ne.s32.totalorder %s250, %s251
      %p263 = scmp.eq.s32.totalorder %s31, 1
      %p264 = por %p262, %p263
      %p266 = scmp.ne.s32.totalorder %s251, %s265
      %p267 = scmp.eq.s32.totalorder %s31, 0
      %p268 = por %p266, %p267
      %s270 = sadd.s32 %s269, 1
      %p273 = scmp.eq.s32.totalorder %s25, 1
      %p274 = scmp.ne.s32.totalorder %s269, %s271
      %p275 = scmp.eq.s32.totalorder %s25, 0
      %p276 = por %p274, %p275
      %p277 = scmp.ne.s32.totalorder %s269, %s271
      %p278 = scmp.eq.s32.totalorder %s30, 1
      %p279 = por %p277, %p278
      %p280 = scmp.ne.s32.totalorder %s271, %s272
      %p281 = scmp.eq.s32.totalorder %s30, 0
      %p282 = por %p280, %p281
      %p283 = scmp.ne.s32.totalorder %s271, %s272
      %p284 = scmp.eq.s32.totalorder %s31, 1
      %p285 = por %p283, %p284
      %p287 = scmp.ne.s32.totalorder %s272, %s286
      %p288 = scmp.eq.s32.totalorder %s31, 0
      %p289 = por %p287, %p288
      %s291 = sadd.s32 %s290, 1
      %p294 = scmp.eq.s32.totalorder %s25, 1
      %p295 = scmp.ne.s32.totalorder %s290, %s292
      %p296 = scmp.eq.s32.totalorder %s25, 0
      %p297 = por %p295, %p296
      %p298 = scmp.ne.s32.totalorder %s290, %s292
      %p299 = scmp.eq.s32.totalorder %s30, 1
      %p300 = por %p298, %p299
      %p301 = scmp.ne.s32.totalorder %s292, %s293
      %p302 = scmp.eq.s32.totalorder %s30, 0
      %p303 = por %p301, %p302
      %p304 = scmp.ne.s32.totalorder %s292, %s293
      %p305 = scmp.eq.s32.totalorder %s31, 1
      %p306 = por %p304, %p305
      %p308 = scmp.ne.s32.totalorder %s293, %s307
      %p309 = scmp.eq.s32.totalorder %s31, 0
      %p310 = por %p308, %p309
      %s311 = ssub.s32 %s25, %s32
      %p312 = scmp.eq.s32.totalorder %s311, 0
      %s314 = sadd.s32 %s313, 1
      %s315 = scalar_select %p312, %s313, %s314
      %p318 = pneg %p312
      %p319 = scmp.eq.s32.totalorder %s25, 1
      %p320 = por %p318, %p319
      %p321 = scmp.ne.s32.totalorder %s313, %s316
      %p322 = scmp.eq.s32.totalorder %s25, 0
      %p323 = por %p321, %p322
      %p324 = scmp.ne.s32.totalorder %s313, %s316
      %p325 = scmp.eq.s32.totalorder %s30, 1
      %p326 = por %p324, %p325
      %p327 = scmp.ne.s32.totalorder %s316, %s317
      %p328 = scmp.eq.s32.totalorder %s30, 0
      %p329 = por %p327, %p328
      %p330 = scmp.ne.s32.totalorder %s316, %s317
      %p331 = scmp.eq.s32.totalorder %s31, 1
      %p332 = por %p330, %p331
      %p334 = scmp.ne.s32.totalorder %s317, %s333
      %p335 = scmp.eq.s32.totalorder %s31, 0
      %p336 = por %p334, %p335
      %p337 = scmp.le.s32.totalorder 1, %s25
      %p338 = scmp.lt.s32.totalorder %s25, 3
      %p339 = pnand %p337, %p338
      %p340 = pneg %p339
      // Predicated region
      $region9: #{tpu_custom_call.1} parent=5 // pred_check
        _
      $region10: #{tpu_custom_call.1} parent=5 // pred_check_branch
        %342 = sbr.rel (%p339) target = $region12
      $region11: #{tpu_custom_call.1} parent=5 // pred_region
        %s343 = ssub.s32 %s25, 1
        // Predicated region
        $region13: #{tpu_custom_call.1} parent=11 // pred_check
          %p344 = pneg %p72
        $region14: #{tpu_custom_call.1} parent=11 // pred_check_branch
          %346 = sbr.rel (%p344) target = $region16
        $region15: #{tpu_custom_call.1} parent=11 // pred_region
          _
        $region16: #{tpu_custom_call.1} parent=11 // pred_fallthru
          _
        // Predicated region
        $region17: #{tpu_custom_call.1} parent=11 // pred_check
          %p347 = pneg %p93
        $region18: #{tpu_custom_call.1} parent=11 // pred_check_branch
          %349 = sbr.rel (%p347) target = $region20
        $region19: #{tpu_custom_call.1} parent=11 // pred_region
          _
        $region20: #{tpu_custom_call.1} parent=11 // pred_fallthru
          _
        // Predicated region
        $region21: #{tpu_custom_call.1} parent=11 // pred_check
          %p350 = pneg %p114
        $region22: #{tpu_custom_call.1} parent=11 // pred_check_branch
          %352 = sbr.rel (%p350) target = $region24
        $region23: #{tpu_custom_call.1} parent=11 // pred_region
          _
        $region24: #{tpu_custom_call.1} parent=11 // pred_fallthru
          _
        // Predicated region
        $region25: #{tpu_custom_call.1} parent=11 // pred_check
          %p353 = pneg %p135
        $region26: #{tpu_custom_call.1} parent=11 // pred_check_branch
          %355 = sbr.rel (%p353) target = $region28
        $region27: #{tpu_custom_call.1} parent=11 // pred_region
          _
        $region28: #{tpu_custom_call.1} parent=11 // pred_fallthru
          _
        // Predicated region
        $region29: #{tpu_custom_call.1} parent=11 // pred_check
          %p356 = pneg %p156
        $region30: #{tpu_custom_call.1} parent=11 // pred_check_branch
          %358 = sbr.rel (%p356) target = $region32
        $region31: #{tpu_custom_call.1} parent=11 // pred_region
          _
        $region32: #{tpu_custom_call.1} parent=11 // pred_fallthru
          _
        // Predicated region
        $region33: #{tpu_custom_call.1} parent=11 // pred_check
          %p359 = pneg %p177
        $region34: #{tpu_custom_call.1} parent=11 // pred_check_branch
          %361 = sbr.rel (%p359) target = $region36
        $region35: #{tpu_custom_call.1} parent=11 // pred_region
          _
        $region36: #{tpu_custom_call.1} parent=11 // pred_fallthru
          _
        // Predicated region
        $region37: #{tpu_custom_call.1} parent=11 // pred_check
          %p362 = pneg %p198
        $region38: #{tpu_custom_call.1} parent=11 // pred_check_branch
          %364 = sbr.rel (%p362) target = $region40
        $region39: #{tpu_custom_call.1} parent=11 // pred_region
          _
        $region40: #{tpu_custom_call.1} parent=11 // pred_fallthru
          _
        // Predicated region
        $region41: #{tpu_custom_call.1} parent=11 // pred_check
          %p365 = pneg %p219
        $region42: #{tpu_custom_call.1} parent=11 // pred_check_branch
          %367 = sbr.rel (%p365) target = $region44
        $region43: #{tpu_custom_call.1} parent=11 // pred_region
          _
        $region44: #{tpu_custom_call.1} parent=11 // pred_fallthru
          _
        // Predicated region
        $region45: #{tpu_custom_call.1} parent=11 // pred_check
          %p368 = pneg %p240
        $region46: #{tpu_custom_call.1} parent=11 // pred_check_branch
          %370 = sbr.rel (%p368) target = $region48
        $region47: #{tpu_custom_call.1} parent=11 // pred_region
          _
        $region48: #{tpu_custom_call.1} parent=11 // pred_fallthru
          _
        // Predicated region
        $region49: #{tpu_custom_call.1} parent=11 // pred_check
          %p371 = pneg %p261
        $region50: #{tpu_custom_call.1} parent=11 // pred_check_branch
          %373 = sbr.rel (%p371) target = $region52
        $region51: #{tpu_custom_call.1} parent=11 // pred_region
          _
        $region52: #{tpu_custom_call.1} parent=11 // pred_fallthru
          _
        // Predicated region
        $region53: #{tpu_custom_call.1} parent=11 // pred_check
          %p374 = pneg %p282
        $region54: #{tpu_custom_call.1} parent=11 // pred_check_branch
          %376 = sbr.rel (%p374) target = $region56
        $region55: #{tpu_custom_call.1} parent=11 // pred_region
          _
        $region56: #{tpu_custom_call.1} parent=11 // pred_fallthru
          _
        // Predicated region
        $region57: #{tpu_custom_call.1} parent=11 // pred_check
          %p377 = pneg %p303
        $region58: #{tpu_custom_call.1} parent=11 // pred_check_branch
          %379 = sbr.rel (%p377) target = $region60
        $region59: #{tpu_custom_call.1} parent=11 // pred_region
          _
        $region60: #{tpu_custom_call.1} parent=11 // pred_fallthru
          _
      $region12: #{tpu_custom_call.1} parent=5 // pred_fallthru
        _
      %p380 = scmp.lt.s32.totalorder %s25, 2
      // Predicated region
      $region61: #{tpu_custom_call.1} parent=5 // pred_check
        %p381 = pneg %p380
      $region62: #{tpu_custom_call.1} parent=5 // pred_check_branch
        %383 = sbr.rel (%p381) target = $region64
      $region63: #{tpu_custom_call.1} parent=5 // pred_region
        // Predicated region
        $region65: #{tpu_custom_call.1} parent=63 // pred_check
          %p384 = pneg %p45
        $region66: #{tpu_custom_call.1} parent=63 // pred_check_branch
          %386 = sbr.rel (%p384) target = $region68
        $region67: #{tpu_custom_call.1} parent=63 // pred_region
          %s387 = sand.u32 %s35, 1
          %s388 = scalar_lea.sflag [#allocation3], %s387
          %s389 = sand.u32 %s35, 1
          %s390 = smul.addr %s389, 8
          %s391 = scalar_lea.vmem [#allocation2], %s390
          %393 = vsyncadd %s388, 0
          %s394 = smul.addr %s25, 8
          %s395 = scalar_lea.hbm %s0, %s394
          %s397 = sshll.u32 %s395, 4
          %s398 = int_to_ptr.hbm [resolvable:$true] %s397
          %s399 = sshll.u32 %s391, 4
          %s400 = int_to_ptr.vmem [resolvable:$true] %s399
          %402 = dma.hbm_to_vmem [thread:$0]  %s398, 128, %s400, %s388
        $region68: #{tpu_custom_call.1} parent=63 // pred_fallthru
          _
      $region64: #{tpu_custom_call.1} parent=5 // pred_fallthru
        _
      %p403 = scmp.le.s32.totalorder 1, %s25
      %p404 = scmp.lt.s32.totalorder %s25, 3
      %p405 = pnand %p403, %p404
      %p406 = pneg %p405
      // Predicated region
      $region69: #{tpu_custom_call.1} parent=5 // pred_check
        _
      $region70: #{tpu_custom_call.1} parent=5 // pred_check_branch
        %408 = sbr.rel (%p405) target = $region72
      $region71: #{tpu_custom_call.1} parent=5 // pred_region
        %s409 = ssub.s32 %s25, 1
        %s410 = sand.u32 %s38, 1
        %s411 = scalar_lea.sflag [#allocation3], %s410
        %s412 = sand.u32 %s38, 1
        %s413 = smul.addr %s412, 8
        %s414 = scalar_lea.vmem [#allocation2], %s413
        // Predicated region
        $region73: #{tpu_custom_call.1} parent=71 // pred_check
          %p415 = pneg %p51
        $region74: #{tpu_custom_call.1} parent=71 // pred_check_branch
          %417 = sbr.rel (%p415) target = $region76
        $region75: #{tpu_custom_call.1} parent=71 // pred_region
          %419 = dma.done %s411, 128
        $region76: #{tpu_custom_call.1} parent=71 // pred_fallthru
          _
        %s420 = sand.u32 %s38, 1
        %s421 = scalar_lea.sflag [#allocation3], %s420
        %s422 = sand.u32 %s38, 1
        %s423 = smul.addr %s422, 8
        %s424 = scalar_lea.vmem [#allocation2], %s423
        %p425 = pneg %p51
        %p426 = pneg %p48
        %p427 = pneg %p72
        %p428 = pneg %p69
        %p429 = pneg %p93
        %p430 = pneg %p90
        %p431 = pneg %p114
        %p432 = pneg %p111
        %p433 = pneg %p135
        %p434 = pneg %p132
        %p435 = pneg %p156
        %p436 = pneg %p153
        %p437 = pneg %p177
        %p438 = pneg %p174
        %p439 = pneg %p198
        %p440 = pneg %p195
        %p441 = pneg %p219
        %p442 = pneg %p216
        %p443 = pneg %p240
        %p444 = pneg %p237
        %p445 = pneg %p261
        %p446 = pneg %p258
        %p447 = pneg %p282
        %p448 = pneg %p279
        %p449 = pneg %p303
        %p450 = pneg %p300
        %p451 = pneg %p329
        %p452 = pneg %p326
        %s453 = sand.u32 %s316, 1
        %s454 = scalar_lea.sflag [#allocation4], %s453
        %s455 = sand.u32 %s316, 1
        %s456 = smul.addr %s455, 8
        %s457 = scalar_lea.vmem [#allocation5], %s456
        %v458 = vld [vmem:[%s414] sm:$0xff]
        %v459 = vld [vmem:[%s1] sm:$0xff]
        %v460 = vld [vmem:[%s1 + $0x8] sm:$0xff]
        %v461 = vld [vmem:[%s1 + $0x10] sm:$0xff]
        %v462 = vld [vmem:[%s1 + $0x18] sm:$0xff]
        %v463 = vld [vmem:[%s2] sm:$0x1]
        %v465 = vperm.slane %v463, 0
        %vm467 = vcmask 261120
        %v469 = vsel %vm467, %v458, 0
        %471 = vmatpush.msra.mxu0 0.0
        %472 = vmatpush.msra.mxu0 0.0
        %473 = vmatpush.msra.mxu0 0.0
        %474 = vmatpush.msra.mxu0 0.0
        %475 = vmatpush.msra.mxu0 0.0
        %476 = vmatpush.msra.mxu0 0.0
        %477 = vmatpush.msra.mxu0 0.0
        %478 = vmatpush.msra.mxu0 0.0
        %479 = vmatpush.msra.mxu0 0.0
        %480 = vmatpush.msra.mxu0 0.0
        %481 = vmatpush.msra.mxu0 0.0
        %482 = vmatpush.msra.mxu0 0.0
        %483 = vmatpush.msra.mxu0 %v462
        %484 = vmatpush.msra.mxu0 %v461
        %485 = vmatpush.msra.mxu0 %v460
        %486 = vmatpush.msra.mxu0 %v459
        %487 = vmatmul.f32.gmra.mxu0 %v469
        %v488 = vpop.f32.mrf.mxu0
        %v489 = vadd.f32 %v465, %v488
        %490 = vdwg.mxu0
        %vm491 = vcmp.ge.f32.partialorder %v489, 0.0
        %v492 = vmul.f32 %v489, 0.1
        %v493 = vsel %vm491, %v489, %v492
        %v494 = vld [vmem:[%s3] sm:$0xff]
        %v495 = vld [vmem:[%s3 + $0x8] sm:$0xff]
        %v496 = vld [vmem:[%s3 + $0x10] sm:$0xff]
        %v497 = vld [vmem:[%s3 + $0x18] sm:$0xff]
        %v498 = vld [vmem:[%s3 + $0x20] sm:$0xff]
        %v499 = vld [vmem:[%s3 + $0x28] sm:$0xff]
        %v500 = vld [vmem:[%s3 + $0x30] sm:$0xff]
        %v501 = vld [vmem:[%s3 + $0x38] sm:$0xff]
        %v502 = vld [vmem:[%s3 + $0x40] sm:$0xff]
        %v503 = vld [vmem:[%s3 + $0x48] sm:$0xff]
        %v504 = vld [vmem:[%s3 + $0x50] sm:$0xff]
        %v505 = vld [vmem:[%s3 + $0x58] sm:$0xff]
        %v506 = vld [vmem:[%s4] sm:$0x1]
        %v508 = vperm.slane %v506, 0
        %vm510 = vcmask 785408
        %v512 = vsel %vm510, %v493, 0
        %514 = vmatpush.msra.mxu0 0.0
        %515 = vmatpush.msra.mxu0 0.0
        %516 = vmatpush.msra.mxu0 0.0
        %517 = vmatpush.msra.mxu0 0.0
        %518 = vmatpush.msra.mxu0 %v505
        %519 = vmatpush.msra.mxu0 %v504
        %520 = vmatpush.msra.mxu0 %v503
        %521 = vmatpush.msra.mxu0 %v502
        %522 = vmatpush.msra.mxu0 %v501
        %523 = vmatpush.msra.mxu0 %v500
        %524 = vmatpush.msra.mxu0 %v499
        %525 = vmatpush.msra.mxu0 %v498
        %526 = vmatpush.msra.mxu0 %v497
        %527 = vmatpush.msra.mxu0 %v496
        %528 = vmatpush.msra.mxu0 %v495
        %529 = vmatpush.msra.mxu0 %v494
        %530 = vmatmul.f32.gmra.mxu0 %v512
        %v531 = vpop.f32.mrf.mxu0
        %v532 = vadd.f32 %v508, %v531
        %533 = vdwg.mxu0
        %vm534 = vcmp.ge.f32.partialorder %v532, 0.0
        %v535 = vmul.f32 %v532, 0.1
        %v536 = vsel %vm534, %v532, %v535
        %v537 = vld [vmem:[%s5] sm:$0xff]
        %v538 = vld [vmem:[%s5 + $0x8] sm:$0xff]
        %v539 = vld [vmem:[%s5 + $0x10] sm:$0xff]
        %v540 = vld [vmem:[%s5 + $0x18] sm:$0xff]
        %v541 = vld [vmem:[%s5 + $0x20] sm:$0xff]
        %v542 = vld [vmem:[%s5 + $0x28] sm:$0xff]
        %v543 = vld [vmem:[%s5 + $0x30] sm:$0xff]
        %v544 = vld [vmem:[%s5 + $0x38] sm:$0xff]
        %v545 = vld [vmem:[%s5 + $0x40] sm:$0xff]
        %v546 = vld [vmem:[%s5 + $0x48] sm:$0xff]
        %v547 = vld [vmem:[%s5 + $0x50] sm:$0xff]
        %v548 = vld [vmem:[%s5 + $0x58] sm:$0xff]
        %v549 = vld [vmem:[%s6] sm:$0x1]
        %v551 = vperm.slane %v549, 0
        %v554 = vsel %vm510, %v536, 0
        %556 = vmatpush.msra.mxu0 0.0
        %557 = vmatpush.msra.mxu0 0.0
        %558 = vmatpush.msra.mxu0 0.0
        %559 = vmatpush.msra.mxu0 0.0
        %560 = vmatpush.msra.mxu0 %v548
        %561 = vmatpush.msra.mxu0 %v547
        %562 = vmatpush.msra.mxu0 %v546
        %563 = vmatpush.msra.mxu0 %v545
        %564 = vmatpush.msra.mxu0 %v544
        %565 = vmatpush.msra.mxu0 %v543
        %566 = vmatpush.msra.mxu0 %v542
        %567 = vmatpush.msra.mxu0 %v541
        %568 = vmatpush.msra.mxu0 %v540
        %569 = vmatpush.msra.mxu0 %v539
        %570 = vmatpush.msra.mxu0 %v538
        %571 = vmatpush.msra.mxu0 %v537
        %572 = vmatmul.f32.gmra.mxu0 %v554
        %v573 = vpop.f32.mrf.mxu0
        %v574 = vadd.f32 %v551, %v573
        %575 = vdwg.mxu0
        %v576 = vmul.f32 %v574, 0.5
        %v577 = vmul.f32 %v576, 1.442695
        %v578 = vpow.pop %v577
        %v579 = vmul.f32 %v578, %v578
        %580 = vrot.lane.b32.xlu0 %v458, 8
        %v581 = vpop.permute.xlu0 %580
        %v583 = vmul.f32 %v578, %v581
        %585 = vrot.lane.b32.xlu0 %v583, 120
        %v586 = vpop.permute.xlu0 %585
        %v588 = vadd.f32 %v574, %v586
        %v589 = vld [vmem:[%s7] sm:$0xff]
        %v590 = vld [vmem:[%s8] sm:$0x1]
        %v592 = vperm.slane %v590, 0
        %vm594 = vcmask 64512
        %v596 = vsel %vm594, %v588, 0
        %598 = vmatpush.msra.mxu0 0.0
        %599 = vmatpush.msra.mxu0 0.0
        %600 = vmatpush.msra.mxu0 0.0
        %601 = vmatpush.msra.mxu0 0.0
        %602 = vmatpush.msra.mxu0 0.0
        %603 = vmatpush.msra.mxu0 0.0
        %604 = vmatpush.msra.mxu0 0.0
        %605 = vmatpush.msra.mxu0 0.0
        %606 = vmatpush.msra.mxu0 0.0
        %607 = vmatpush.msra.mxu0 0.0
        %608 = vmatpush.msra.mxu0 0.0
        %609 = vmatpush.msra.mxu0 0.0
        %610 = vmatpush.msra.mxu0 0.0
        %611 = vmatpush.msra.mxu0 0.0
        %612 = vmatpush.msra.mxu0 0.0
        %613 = vmatpush.msra.mxu0 %v589
        %614 = vmatmul.f32.gmra.mxu0 %v596
        %v615 = vpop.f32.mrf.mxu0
        %v616 = vadd.f32 %v592, %v615
        %617 = vdwg.mxu0
        %vm618 = vcmp.ge.f32.partialorder %v616, 0.0
        %v619 = vmul.f32 %v616, 0.1
        %v620 = vsel %vm618, %v616, %v619
        %v621 = vld [vmem:[%s9] sm:$0xff]
        %v622 = vld [vmem:[%s9 + $0x8] sm:$0xff]
        %v623 = vld [vmem:[%s9 + $0x10] sm:$0xff]
        %v624 = vld [vmem:[%s9 + $0x18] sm:$0xff]
        %v625 = vld [vmem:[%s10] sm:$0x1]
        %v627 = vperm.slane %v625, 0
        %v630 = vsel %vm467, %v620, 0
        %632 = vmatpush.msra.mxu0 0.0
        %633 = vmatpush.msra.mxu0 0.0
        %634 = vmatpush.msra.mxu0 0.0
        %635 = vmatpush.msra.mxu0 0.0
        %636 = vmatpush.msra.mxu0 0.0
        %637 = vmatpush.msra.mxu0 0.0
        %638 = vmatpush.msra.mxu0 0.0
        %639 = vmatpush.msra.mxu0 0.0
        %640 = vmatpush.msra.mxu0 0.0
        %641 = vmatpush.msra.mxu0 0.0
        %642 = vmatpush.msra.mxu0 0.0
        %643 = vmatpush.msra.mxu0 0.0
        %644 = vmatpush.msra.mxu0 %v624
        %645 = vmatpush.msra.mxu0 %v623
        %646 = vmatpush.msra.mxu0 %v622
        %647 = vmatpush.msra.mxu0 %v621
        %648 = vmatmul.f32.gmra.mxu0 %v630
        %v649 = vpop.f32.mrf.mxu0
        %v650 = vadd.f32 %v627, %v649
        %651 = vdwg.mxu0
        %vm652 = vcmp.ge.f32.partialorder %v650, 0.0
        %v653 = vmul.f32 %v650, 0.1
        %v654 = vsel %vm652, %v650, %v653
        %v655 = vld [vmem:[%s11] sm:$0xff]
        %v656 = vld [vmem:[%s11 + $0x8] sm:$0xff]
        %v657 = vld [vmem:[%s11 + $0x10] sm:$0xff]
        %v658 = vld [vmem:[%s11 + $0x18] sm:$0xff]
        %v659 = vld [vmem:[%s12] sm:$0x1]
        %v661 = vperm.slane %v659, 0
        %v664 = vsel %vm467, %v654, 0
        %666 = vmatpush.msra.mxu0 0.0
        %667 = vmatpush.msra.mxu0 0.0
        %668 = vmatpush.msra.mxu0 0.0
        %669 = vmatpush.msra.mxu0 0.0
        %670 = vmatpush.msra.mxu0 0.0
        %671 = vmatpush.msra.mxu0 0.0
        %672 = vmatpush.msra.mxu0 0.0
        %673 = vmatpush.msra.mxu0 0.0
        %674 = vmatpush.msra.mxu0 0.0
        %675 = vmatpush.msra.mxu0 0.0
        %676 = vmatpush.msra.mxu0 0.0
        %677 = vmatpush.msra.mxu0 0.0
        %678 = vmatpush.msra.mxu0 %v658
        %679 = vmatpush.msra.mxu0 %v657
        %680 = vmatpush.msra.mxu0 %v656
        %681 = vmatpush.msra.mxu0 %v655
        %682 = vmatmul.f32.gmra.mxu0 %v664
        %v683 = vpop.f32.mrf.mxu0
        %v684 = vadd.f32 %v661, %v683
        %685 = vdwg.mxu0
        %687 = vrot.lane.b32.xlu0 %v574, 16
        %v688 = vpop.permute.xlu0 %687
        %691 = vrot.lane.b32.xlu0 %v579, 16
        %v692 = vpop.permute.xlu0 %691
        %694 = vrot.lane.b32.xlu0 %v588, 40
        %v695 = vpop.permute.xlu0 %694
        %vm697 = vcmask 130048
        %v698 = vsel %vm697, %v684, %v688
        %vm699 = vcmask 195584
        %v700 = vsel %vm699, %v698, %v692
        %vm701 = vcmask 326656
        %v702 = vsel %vm701, %v700, %v695
        %vm703 = vcmask 392192
        %v704 = vsel %vm703, %v702, 0.0
        %705 = vst [vmem:[%s457] sm:$0xff] %v704
        %s706 = sand.u32 %s316, 1
        %s707 = scalar_lea.sflag [#allocation4], %s706
        %s708 = sand.u32 %s316, 1
        %s709 = smul.addr %s708, 8
        %s710 = scalar_lea.vmem [#allocation5], %s709
        // Predicated region
        $region77: #{tpu_custom_call.1} parent=71 // pred_check
          %p711 = pneg %p326
        $region78: #{tpu_custom_call.1} parent=71 // pred_check_branch
          %713 = sbr.rel (%p711) target = $region80
        $region79: #{tpu_custom_call.1} parent=71 // pred_region
          %715 = vsyncadd %s707, 0
          %s716 = smul.addr %s30, 8
          %s717 = scalar_lea.hbm %s13, %s716
          %s719 = sshll.u32 %s710, 4
          %s720 = int_to_ptr.vmem [resolvable:$true] %s719
          %s721 = sshll.u32 %s717, 4
          %s722 = int_to_ptr.hbm [resolvable:$true] %s721
          %724 = dma.vmem_to_hbm [thread:$0]  %s720, 128, %s722, %s707
        $region80: #{tpu_custom_call.1} parent=71 // pred_fallthru
          _
      $region72: #{tpu_custom_call.1} parent=5 // pred_fallthru
        _
      %p725 = scmp.le.s32.totalorder 2, %s25
      // Predicated region
      $region81: #{tpu_custom_call.1} parent=5 // pred_check
        %p726 = pneg %p725
      $region82: #{tpu_custom_call.1} parent=5 // pred_check_branch
        %728 = sbr.rel (%p726) target = $region84
      $region83: #{tpu_custom_call.1} parent=5 // pred_region
        %s729 = ssub.s32 %s25, 2
        // Predicated region
        $region85: #{tpu_custom_call.1} parent=83 // pred_check
          %p730 = pneg %p332
        $region86: #{tpu_custom_call.1} parent=83 // pred_check_branch
          %732 = sbr.rel (%p730) target = $region88
        $region87: #{tpu_custom_call.1} parent=83 // pred_region
          %s733 = sand.u32 %s317, 1
          %s734 = scalar_lea.sflag [#allocation4], %s733
          %s735 = sand.u32 %s317, 1
          %s736 = smul.addr %s735, 8
          %s737 = scalar_lea.vmem [#allocation5], %s736
          %739 = dma.done %s734, 128
        $region88: #{tpu_custom_call.1} parent=83 // pred_fallthru
          _
      $region84: #{tpu_custom_call.1} parent=5 // pred_fallthru
        _
    $region6: #{tpu_custom_call.1} parent=1 // loop_footer
      %s29 = sadd.s32 1, %s25
    $region7: #{tpu_custom_call.1} parent=1 // loop_footer_branch
      %24 = sbr.rel target = $region3
    $region8: #{tpu_custom_call.1} parent=1 // loop_exit
      _
    %740 = vsyncpa [#allocation3], 1
    %s741 = scalar_lea.sflag [#allocation3], 1
    %742 = vsyncpa %s741, 1
    %743 = vsyncpa [#allocation4], 1
    %s744 = scalar_lea.sflag [#allocation4], 1
    %745 = vsyncpa %s744, 1

</llo_original>
